<compile_context>
chip_gen: v5e
topology: v5e:2x2
jax: 0.10.0
libtpu: 0.0.40
codegen_flags: <defaults>
</compile_context>

<pallas_src>
import functools
import math

import jax
import jax.numpy as jnp
from jax.experimental import pallas as pl
from jax.experimental.pallas import tpu as pltpu

BN_EPS = 1e-5
_LANE = 128
_SUBLANE = 8


def _round_up(x, m):
    return (x + m - 1) // m * m


def _cdiv(a, b):
    return -(-a // b)


def _make_kernel(num_hidden):
    """Kernel body for `num_hidden` (Linear+foldedBN -> ReLU) encoder blocks."""

    def kernel(*refs):
        # ref order:
        #   x,
        #   [W_i, b_i] * num_hidden   (BN already folded into W, b),
        #   W_fc1, b_fc1, W_fc2, b_fc2, W_cls, b_cls,
        #   out_xa, out_logits
        idx = 0
        x = refs[idx][...]
        idx += 1

        # ---- encoder: (Linear + folded BN) -> ReLU ; Dropout is identity in eval ----
        for _ in range(num_hidden):
            w = refs[idx][...]
            b = refs[idx + 1][...]
            idx += 2
            h = jnp.dot(x.astype(w.dtype), w, preferred_element_type=jnp.float32) + b
            x = jnp.maximum(h, 0.0)

        # ---- fc1 -> ReLU -> xa ----
        w1 = refs[idx][...]
        b1 = refs[idx + 1][...]
        idx += 2
        xa = jnp.maximum(
            jnp.dot(x.astype(w1.dtype), w1, preferred_element_type=jnp.float32) + b1, 0.0)

        # ---- fc2 -> ReLU -> xb ----
        w2 = refs[idx][...]
        b2 = refs[idx + 1][...]
        idx += 2
        xb = jnp.maximum(
            jnp.dot(xa.astype(w2.dtype), w2, preferred_element_type=jnp.float32) + b2, 0.0)

        # ---- classifier -> logits (softmax is done in the wrapper on real classes) ----
        wc = refs[idx][...]
        bc = refs[idx + 1][...]
        idx += 2
        logits = jnp.dot(xb.astype(wc.dtype), wc, preferred_element_type=jnp.float32) + bc

        out_xa = refs[idx]
        out_l = refs[idx + 1]
        out_xa[...] = xa.astype(out_xa.dtype)
        out_l[...] = logits.astype(out_l.dtype)

    return kernel


def init_ili_fcn_params(key, input_dim, hidden_dims, xa_dim, num_classes):
    """PyTorch-style init. Linear weights stored as (in, out); BN stats nontrivial
    so the BN-fold path is actually exercised by the correctness check."""

    def linear(key, fan_in, fan_out):
        kw, kb = jax.random.split(key)
        bound = 1.0 / jnp.sqrt(jnp.float32(fan_in))
        w = jax.random.uniform(kw, (fan_in, fan_out), jnp.float32, -bound, bound)
        b = jax.random.uniform(kb, (1, fan_out), jnp.float32, -bound, bound)
        return w, b

    params = {"encoder": [], "fc1": None, "fc2": None, "fc_classifier": None}
    prev = input_dim
    for h in hidden_dims:
        key, k_lin, k_g, k_b, k_m, k_v = jax.random.split(key, 6)
        w, b = linear(k_lin, prev, h)
        bn = {
            "gamma": jax.random.uniform(k_g, (1, h), jnp.float32, 0.5, 1.5),
            "beta": 0.1 * jax.random.normal(k_b, (1, h), jnp.float32),
            "mean": 0.1 * jax.random.normal(k_m, (1, h), jnp.float32),
            "var": jax.random.uniform(k_v, (1, h), jnp.float32, 0.5, 1.5),
        }
        params["encoder"].append({"w": w, "b": b, "bn": bn})
        prev = h

    key, s1 = jax.random.split(key)
    params["fc1"] = linear(s1, prev, xa_dim)
    key, s2 = jax.random.split(key)
    params["fc2"] = linear(s2, xa_dim, xa_dim)
    key, s3 = jax.random.split(key)
    params["fc_classifier"] = linear(s3, xa_dim, num_classes)
    return params


@functools.partial(
    jax.jit, static_argnames=("xa_dim", "num_classes", "param_dtype", "batch_tile"))
def ili_fcn_forward(x, params, *, xa_dim, num_classes,
                    param_dtype=jnp.bfloat16, batch_tile=1024):
    if x.ndim == 1:
        x = x[None, :]
    x = x.astype(jnp.float32)
    batch, input_dim = x.shape
    num_hidden = len(params["encoder"])

    # ---------- wrapper-side prep: fold BN into Linear, pad to 128-lane shapes ----------
    # Feature dims are padded to exactly 128 (never more): lane-dense stores and a
    # perfect fit for the MXU on all generations; no wasted weight bytes.
    def pad_mat(w, k_p, n_p):
        return jnp.pad(w, ((0, k_p - w.shape[0]), (0, n_p - w.shape[1]))).astype(param_dtype)

    def pad_bias(b, n_p):
        # Biases stay f32 (negligible size; avoids any low-precision representability issues).
        return jnp.pad(b.astype(jnp.float32), ((0, 0), (0, n_p - b.shape[1])))

    weight_args = []
    layer_dims = []                       # (K_padded, N_padded) per matmul, for CostEstimate
    in_p = _round_up(input_dim, _LANE)
    prev_p = in_p

    for blk in params["encoder"]:
        w, b, bn = blk["w"], blk["b"], blk["bn"]
        h = w.shape[1]
        h_p = _round_up(h, _LANE)
        scale = bn["gamma"] * jax.lax.rsqrt(bn["var"] + BN_EPS)       # (1, h)
        w_f = w * scale                                               # fold BN scale into W cols
        b_f = (b - bn["mean"]) * scale + bn["beta"]                   # fold shift into bias
        weight_args += [pad_mat(w_f, prev_p, h_p), pad_bias(b_f, h_p)]
        layer_dims.append((prev_p, h_p))
        prev_p = h_p

    xa_p = _round_up(xa_dim, _LANE)
    c_p = _round_up(num_classes, _LANE)

    w1, b1 = params["fc1"]
    weight_args += [pad_mat(w1, prev_p, xa_p), pad_bias(b1, xa_p)]
    layer_dims.append((prev_p, xa_p))

    w2, b2 = params["fc2"]
    weight_args += [pad_mat(w2, xa_p, xa_p), pad_bias(b2, xa_p)]
    layer_dims.append((xa_p, xa_p))

    wc, bc = params["fc_classifier"]
    weight_args += [pad_mat(wc, xa_p, c_p), pad_bias(bc, c_p)]
    layer_dims.append((xa_p, c_p))

    # ---------- batch tiling ----------
    # Minimize batch padding (tb = cdiv(batch, num_tiles) rounded to a sublane), and
    # force >= 2 tiles whenever the batch is non-trivial so v7x's two TensorCores both
    # get work under dimension_semantics=("parallel",).
    num_tiles = max(1, _cdiv(batch, batch_tile))
    if num_tiles == 1 and batch >= 2 * _SUBLANE:
        num_tiles = 2
    tb = _round_up(_cdiv(batch, num_tiles), _SUBLANE)
    batch_p = _round_up(batch, tb)
    grid = (batch_p // tb,)

    # Pad, then cast the input to param_dtype so the first matmul is MXU-native too.
    x_p = jnp.pad(x, ((0, batch_p - batch), (0, in_p - input_dim))).astype(param_dtype)

    in_specs = [pl.BlockSpec((tb, in_p), lambda i: (i, 0))]
    for a in weight_args:
        # Full-array block, constant index -> stays resident in VMEM across batch tiles.
        in_specs.append(pl.BlockSpec(a.shape, lambda i: (0, 0)))

    out_shapes = (
        jax.ShapeDtypeStruct((batch_p, xa_p), jnp.float32),   # xa (padded)
        jax.ShapeDtypeStruct((batch_p, c_p), jnp.float32),    # logits (padded)
    )
    out_specs = (
        pl.BlockSpec((tb, xa_p), lambda i: (i, 0)),
        pl.BlockSpec((tb, c_p), lambda i: (i, 0)),
    )

    # ---------- cost estimate + VMEM budget ----------
    flops = 2 * batch_p * sum(k * n for k, n in layer_dims)
    param_bytes = sum(math.prod(a.shape) * a.dtype.itemsize for a in weight_args)
    out_bytes = sum(math.prod(s.shape) * jnp.dtype(s.dtype).itemsize for s in out_shapes)
    x_bytes = math.prod(x_p.shape) * x_p.dtype.itemsize
    cost = pl.CostEstimate(flops=int(flops), transcendentals=0,
                           bytes_accessed=int(param_bytes + out_bytes + x_bytes))

    # 2x params (auto double-buffered inputs) + 2x per-tile activation/output I/O + margin.
    # Clamped to [16 MiB, 36 MiB]: above v5e's 16 MiB scoped default, comfortably below
    # v7x's 64 MiB physical VMEM (Mosaic keeps internal scratch headroom).
    tile_io_bytes = tb * (in_p * x_p.dtype.itemsize + (xa_p + c_p) * 4)
    vmem_limit = int(min(36 << 20,
                         max(16 << 20, 2 * param_bytes + 2 * tile_io_bytes + (4 << 20))))

    fn = pl.pallas_call(
        _make_kernel(num_hidden),
        grid=grid,
        in_specs=in_specs,
        out_specs=out_specs,
        out_shape=out_shapes,
        compiler_params=pltpu.CompilerParams(
            dimension_semantics=("parallel",),     # megacore: batch tiles across TensorCores
            vmem_limit_bytes=vmem_limit),
        cost_estimate=cost,
    )
    xa_pad, logits_pad = fn(x_p, *weight_args)

    xa = xa_pad[:batch, :xa_dim]
    logits = logits_pad[:batch, :num_classes]
    # Softmax on the tiny (batch, num_classes) slab in plain JAX: exact, negligible cost,
    # and removes the widest padded store from the kernel.
    classes_p = jax.nn.softmax(logits, axis=1)
    return classes_p, xa, logits


def _reference_forward(x, params):
    """Plain-JAX reference (unfused BN, unpadded) for correctness checking."""
    h = x.astype(jnp.float32)
    if h.ndim == 1:
        h = h[None, :]
    for blk in params["encoder"]:
        h = h @ blk["w"] + blk["b"]
        bn = blk["bn"]
        h = (h - bn["mean"]) / jnp.sqrt(bn["var"] + BN_EPS) * bn["gamma"] + bn["beta"]
        h = jnp.maximum(h, 0.0)
    w1, b1 = params["fc1"]
    xa = jnp.maximum(h @ w1 + b1, 0.0)
    w2, b2 = params["fc2"]
    xb = jnp.maximum(xa @ w2 + b2, 0.0)
    wc, bc = params["fc_classifier"]
    logits = xb @ wc + bc
    classes_p = jax.nn.softmax(logits, axis=1)
    return classes_p, xa, logits


if __name__ == "__main__":
    # Small, module-consistent shapes.
    input_dim = 16
    hidden_dims = (32, 32)
    xa_dim = 32
    num_classes = 8
    batch = 8

    key = jax.random.PRNGKey(0)
    key_x, key_p = jax.random.split(key)
    x = jax.random.normal(key_x, (batch, input_dim), jnp.float32)
    params = init_ili_fcn_params(key_p, input_dim, hidden_dims, xa_dim, num_classes)

    ref_c, ref_xa, ref_l = _reference_forward(x, params)

    # --- strict correctness path: f32 params vs. pure-JAX (unfused, unpadded) reference ---
    c32, xa32, l32 = ili_fcn_forward(
        x, params, xa_dim=xa_dim, num_classes=num_classes, param_dtype=jnp.float32)
    jax.block_until_ready((c32, xa32, l32))
    assert jnp.allclose(xa32, ref_xa, atol=1e-5, rtol=1e-5), "xa mismatch (f32)"
    assert jnp.allclose(l32, ref_l, atol=1e-5, rtol=1e-5), "logits mismatch (f32)"
    assert jnp.allclose(c32, ref_c, atol=1e-5, rtol=1e-5), "classes_p mismatch (f32)"

    # --- default perf path: bf16 weights/activations on the MXU, f32 accumulation ---
    classes_p, xa, logits = ili_fcn_forward(
        x, params, xa_dim=xa_dim, num_classes=num_classes)
    jax.block_until_ready((classes_p, xa, logits))
    assert jnp.allclose(xa, ref_xa, atol=5e-2, rtol=5e-2), "xa mismatch (bf16)"
    assert jnp.allclose(logits, ref_l, atol=5e-2, rtol=5e-2), "logits mismatch (bf16)"
    assert jnp.allclose(classes_p, ref_c, atol=5e-2, rtol=5e-2), "classes_p mismatch (bf16)"

    print("KERNEL_OK")
</pallas_src>

<mosaic_0001>
module attributes {stable_mosaic.version = 11 : i64} {
  func.func @kernel(%arg0: i32, %arg1: memref<8x128xf32, #tpu.memory_space<vmem>>, %arg2: memref<128x128xf32, #tpu.memory_space<vmem>>, %arg3: memref<1x128xf32, #tpu.memory_space<vmem>>, %arg4: memref<128x128xf32, #tpu.memory_space<vmem>>, %arg5: memref<1x128xf32, #tpu.memory_space<vmem>>, %arg6: memref<128x128xf32, #tpu.memory_space<vmem>>, %arg7: memref<1x128xf32, #tpu.memory_space<vmem>>, %arg8: memref<128x128xf32, #tpu.memory_space<vmem>>, %arg9: memref<1x128xf32, #tpu.memory_space<vmem>>, %arg10: memref<128x128xf32, #tpu.memory_space<vmem>>, %arg11: memref<1x128xf32, #tpu.memory_space<vmem>>, %arg12: memref<8x128xf32, #tpu.memory_space<vmem>>, %arg13: memref<8x128xf32, #tpu.memory_space<vmem>>) attributes {dimension_semantics = [#tpu.dimension_semantics<parallel>], iteration_bounds = array<i64: 1>, scalar_prefetch = 0 : i64, scratch_operands = 0 : i64, tpu.core_type = #tpu.core_type<tc>, window_params = [{transform_indices = @transform_0, window_bounds = array<i64: 8, 128>}, {pipeline_mode = #tpu.pipeline_mode<synchronous>, transform_indices = @transform_1, window_bounds = array<i64: 128, 128>}, {pipeline_mode = #tpu.pipeline_mode<synchronous>, transform_indices = @transform_2, window_bounds = array<i64: 1, 128>}, {pipeline_mode = #tpu.pipeline_mode<synchronous>, transform_indices = @transform_3, window_bounds = array<i64: 128, 128>}, {pipeline_mode = #tpu.pipeline_mode<synchronous>, transform_indices = @transform_4, window_bounds = array<i64: 1, 128>}, {pipeline_mode = #tpu.pipeline_mode<synchronous>, transform_indices = @transform_5, window_bounds = array<i64: 128, 128>}, {pipeline_mode = #tpu.pipeline_mode<synchronous>, transform_indices = @transform_6, window_bounds = array<i64: 1, 128>}, {pipeline_mode = #tpu.pipeline_mode<synchronous>, transform_indices = @transform_7, window_bounds = array<i64: 128, 128>}, {pipeline_mode = #tpu.pipeline_mode<synchronous>, transform_indices = @transform_8, window_bounds = array<i64: 1, 128>}, {pipeline_mode = #tpu.pipeline_mode<synchronous>, transform_indices = @transform_9, window_bounds = array<i64: 128, 128>}, {pipeline_mode = #tpu.pipeline_mode<synchronous>, transform_indices = @transform_10, window_bounds = array<i64: 1, 128>}, {transform_indices = @transform_11, window_bounds = array<i64: 8, 128>}, {transform_indices = @transform_12, window_bounds = array<i64: 8, 128>}]} {
    %c0 = arith.constant 0 : index
    %c0_0 = arith.constant 0 : index
    %0 = vector.load %arg1[%c0, %c0_0] : memref<8x128xf32, #tpu.memory_space<vmem>>, vector<8x128xf32>
    %c0_1 = arith.constant 0 : index
    %c0_2 = arith.constant 0 : index
    %1 = vector.load %arg2[%c0_1, %c0_2] : memref<128x128xf32, #tpu.memory_space<vmem>>, vector<128x128xf32>
    %c0_3 = arith.constant 0 : index
    %c0_4 = arith.constant 0 : index
    %2 = vector.load %arg3[%c0_3, %c0_4] : memref<1x128xf32, #tpu.memory_space<vmem>>, vector<1x128xf32>
    %cst = arith.constant dense<0.000000e+00> : vector<8x128xf32>
    %3 = tpu.matmul %0, %1, %cst {dimension_numbers = #tpu.dot_dimension_numbers<[1], [0], [0], [1], [0, 0, 1, 1], [], []>} : vector<8x128xf32>, vector<128x128xf32>, vector<8x128xf32> -> vector<8x128xf32>
    %4 = vector.broadcast %2 : vector<1x128xf32> to vector<8x128xf32>
    %5 = arith.addf %3, %4 : vector<8x128xf32>
    %cst_5 = arith.constant 0.000000e+00 : f32
    %6 = vector.broadcast %cst_5 : f32 to vector<8x128xf32>
    %7 = arith.maximumf %5, %6 : vector<8x128xf32>
    %c0_6 = arith.constant 0 : index
    %c0_7 = arith.constant 0 : index
    %8 = vector.load %arg4[%c0_6, %c0_7] : memref<128x128xf32, #tpu.memory_space<vmem>>, vector<128x128xf32>
    %c0_8 = arith.constant 0 : index
    %c0_9 = arith.constant 0 : index
    %9 = vector.load %arg5[%c0_8, %c0_9] : memref<1x128xf32, #tpu.memory_space<vmem>>, vector<1x128xf32>
    %cst_10 = arith.constant dense<0.000000e+00> : vector<8x128xf32>
    %10 = tpu.matmul %7, %8, %cst_10 {dimension_numbers = #tpu.dot_dimension_numbers<[1], [0], [0], [1], [0, 0, 1, 1], [], []>} : vector<8x128xf32>, vector<128x128xf32>, vector<8x128xf32> -> vector<8x128xf32>
    %11 = vector.broadcast %9 : vector<1x128xf32> to vector<8x128xf32>
    %12 = arith.addf %10, %11 : vector<8x128xf32>
    %cst_11 = arith.constant 0.000000e+00 : f32
    %13 = vector.broadcast %cst_11 : f32 to vector<8x128xf32>
    %14 = arith.maximumf %12, %13 : vector<8x128xf32>
    %c0_12 = arith.constant 0 : index
    %c0_13 = arith.constant 0 : index
    %15 = vector.load %arg6[%c0_12, %c0_13] : memref<128x128xf32, #tpu.memory_space<vmem>>, vector<128x128xf32>
    %c0_14 = arith.constant 0 : index
    %c0_15 = arith.constant 0 : index
    %16 = vector.load %arg7[%c0_14, %c0_15] : memref<1x128xf32, #tpu.memory_space<vmem>>, vector<1x128xf32>
    %cst_16 = arith.constant dense<0.000000e+00> : vector<8x128xf32>
    %17 = tpu.matmul %14, %15, %cst_16 {dimension_numbers = #tpu.dot_dimension_numbers<[1], [0], [0], [1], [0, 0, 1, 1], [], []>} : vector<8x128xf32>, vector<128x128xf32>, vector<8x128xf32> -> vector<8x128xf32>
    %18 = vector.broadcast %16 : vector<1x128xf32> to vector<8x128xf32>
    %19 = arith.addf %17, %18 : vector<8x128xf32>
    %cst_17 = arith.constant 0.000000e+00 : f32
    %20 = vector.broadcast %cst_17 : f32 to vector<8x128xf32>
    %21 = arith.maximumf %19, %20 : vector<8x128xf32>
    %c0_18 = arith.constant 0 : index
    %c0_19 = arith.constant 0 : index
    %22 = vector.load %arg8[%c0_18, %c0_19] : memref<128x128xf32, #tpu.memory_space<vmem>>, vector<128x128xf32>
    %c0_20 = arith.constant 0 : index
    %c0_21 = arith.constant 0 : index
    %23 = vector.load %arg9[%c0_20, %c0_21] : memref<1x128xf32, #tpu.memory_space<vmem>>, vector<1x128xf32>
    %cst_22 = arith.constant dense<0.000000e+00> : vector<8x128xf32>
    %24 = tpu.matmul %21, %22, %cst_22 {dimension_numbers = #tpu.dot_dimension_numbers<[1], [0], [0], [1], [0, 0, 1, 1], [], []>} : vector<8x128xf32>, vector<128x128xf32>, vector<8x128xf32> -> vector<8x128xf32>
    %25 = vector.broadcast %23 : vector<1x128xf32> to vector<8x128xf32>
    %26 = arith.addf %24, %25 : vector<8x128xf32>
    %cst_23 = arith.constant 0.000000e+00 : f32
    %27 = vector.broadcast %cst_23 : f32 to vector<8x128xf32>
    %28 = arith.maximumf %26, %27 : vector<8x128xf32>
    %c0_24 = arith.constant 0 : index
    %c0_25 = arith.constant 0 : index
    %29 = vector.load %arg10[%c0_24, %c0_25] : memref<128x128xf32, #tpu.memory_space<vmem>>, vector<128x128xf32>
    %c0_26 = arith.constant 0 : index
    %c0_27 = arith.constant 0 : index
    %30 = vector.load %arg11[%c0_26, %c0_27] : memref<1x128xf32, #tpu.memory_space<vmem>>, vector<1x128xf32>
    %cst_28 = arith.constant dense<0.000000e+00> : vector<8x128xf32>
    %31 = tpu.matmul %28, %29, %cst_28 {dimension_numbers = #tpu.dot_dimension_numbers<[1], [0], [0], [1], [0, 0, 1, 1], [], []>} : vector<8x128xf32>, vector<128x128xf32>, vector<8x128xf32> -> vector<8x128xf32>
    %32 = vector.broadcast %30 : vector<1x128xf32> to vector<8x128xf32>
    %33 = arith.addf %31, %32 : vector<8x128xf32>
    %c0_29 = arith.constant 0 : index
    %c0_30 = arith.constant 0 : index
    %34 = vector.load %arg12[%c0_29, %c0_30] : memref<8x128xf32, #tpu.memory_space<vmem>>, vector<8x128xf32>
    tpu.vector_store %arg12[%c0_29, %c0_30], %21 {strides = array<i32>} : memref<8x128xf32, #tpu.memory_space<vmem>>, vector<8x128xf32>,
    %c0_31 = arith.constant 0 : index
    %c0_32 = arith.constant 0 : index
    %35 = vector.load %arg13[%c0_31, %c0_32] : memref<8x128xf32, #tpu.memory_space<vmem>>, vector<8x128xf32>
    tpu.vector_store %arg13[%c0_31, %c0_32], %33 {strides = array<i32>} : memref<8x128xf32, #tpu.memory_space<vmem>>, vector<8x128xf32>,
    return
  }
  func.func @transform_0(%arg0: i32) -> (i32, i32) {
    %c0_i32 = arith.constant 0 : i32
    %c0_i32_0 = arith.constant 0 : i32
    return %arg0, %c0_i32 : i32, i32
  }
  func.func @transform_1(%arg0: i32) -> (i32, i32) {
    %c0_i32 = arith.constant 0 : i32
    %c0_i32_0 = arith.constant 0 : i32
    %c0_i32_1 = arith.constant 0 : i32
    return %c0_i32, %c0_i32_0 : i32, i32
  }
  func.func @transform_2(%arg0: i32) -> (i32, i32) {
    %c0_i32 = arith.constant 0 : i32
    %c0_i32_0 = arith.constant 0 : i32
    %c0_i32_1 = arith.constant 0 : i32
    return %c0_i32, %c0_i32_0 : i32, i32
  }
  func.func @transform_3(%arg0: i32) -> (i32, i32) {
    %c0_i32 = arith.constant 0 : i32
    %c0_i32_0 = arith.constant 0 : i32
    %c0_i32_1 = arith.constant 0 : i32
    return %c0_i32, %c0_i32_0 : i32, i32
  }
  func.func @transform_4(%arg0: i32) -> (i32, i32) {
    %c0_i32 = arith.constant 0 : i32
    %c0_i32_0 = arith.constant 0 : i32
    %c0_i32_1 = arith.constant 0 : i32
    return %c0_i32, %c0_i32_0 : i32, i32
  }
  func.func @transform_5(%arg0: i32) -> (i32, i32) {
    %c0_i32 = arith.constant 0 : i32
    %c0_i32_0 = arith.constant 0 : i32
    %c0_i32_1 = arith.constant 0 : i32
    return %c0_i32, %c0_i32_0 : i32, i32
  }
  func.func @transform_6(%arg0: i32) -> (i32, i32) {
    %c0_i32 = arith.constant 0 : i32
    %c0_i32_0 = arith.constant 0 : i32
    %c0_i32_1 = arith.constant 0 : i32
    return %c0_i32, %c0_i32_0 : i32, i32
  }
  func.func @transform_7(%arg0: i32) -> (i32, i32) {
    %c0_i32 = arith.constant 0 : i32
    %c0_i32_0 = arith.constant 0 : i32
    %c0_i32_1 = arith.constant 0 : i32
    return %c0_i32, %c0_i32_0 : i32, i32
  }
  func.func @transform_8(%arg0: i32) -> (i32, i32) {
    %c0_i32 = arith.constant 0 : i32
    %c0_i32_0 = arith.constant 0 : i32
    %c0_i32_1 = arith.constant 0 : i32
    return %c0_i32, %c0_i32_0 : i32, i32
  }
  func.func @transform_9(%arg0: i32) -> (i32, i32) {
    %c0_i32 = arith.constant 0 : i32
    %c0_i32_0 = arith.constant 0 : i32
    %c0_i32_1 = arith.constant 0 : i32
    return %c0_i32, %c0_i32_0 : i32, i32
  }
  func.func @transform_10(%arg0: i32) -> (i32, i32) {
    %c0_i32 = arith.constant 0 : i32
    %c0_i32_0 = arith.constant 0 : i32
    %c0_i32_1 = arith.constant 0 : i32
    return %c0_i32, %c0_i32_0 : i32, i32
  }
  func.func @transform_11(%arg0: i32) -> (i32, i32) {
    %c0_i32 = arith.constant 0 : i32
    %c0_i32_0 = arith.constant 0 : i32
    return %arg0, %c0_i32 : i32, i32
  }
  func.func @transform_12(%arg0: i32) -> (i32, i32) {
    %c0_i32 = arith.constant 0 : i32
    %c0_i32_0 = arith.constant 0 : i32
    return %arg0, %c0_i32 : i32, i32
  }
}

</mosaic_0001>

<llo_original>
// kernel: ili_fcn_forward.1
$region0: #{ili_fcn_forward.1}
  #allocation0 [shape = 'u32[]', space=smem, size = 0x4, offset = 0x4, fixed_abs, tag = 'smem constant byte address 0x4 - core index']
  #allocation1 [shape = 'u32[72,128]{1,0:T(1,128)}', space=vmem, size = 0x9000, scoped, tag = 'internal scratch']
  %s0 = inlined_call_operand.vmem [shape: f32[8,128], index: 0, kind: input, shape index: {}]
  %s1 = inlined_call_operand.vmem [shape: f32[128,128], index: 1, kind: input, shape index: {}]
  %s2 = inlined_call_operand.vmem [shape: f32[1,128], index: 2, kind: input, shape index: {}]
  %s3 = inlined_call_operand.vmem [shape: f32[128,128], index: 3, kind: input, shape index: {}]
  %s4 = inlined_call_operand.vmem [shape: f32[1,128], index: 4, kind: input, shape index: {}]
  %s5 = inlined_call_operand.vmem [shape: f32[128,128], index: 5, kind: input, shape index: {}]
  %s6 = inlined_call_operand.vmem [shape: f32[1,128], index: 6, kind: input, shape index: {}]
  %s7 = inlined_call_operand.vmem [shape: f32[128,128], index: 7, kind: input, shape index: {}]
  %s8 = inlined_call_operand.vmem [shape: f32[1,128], index: 8, kind: input, shape index: {}]
  %s9 = inlined_call_operand.vmem [shape: f32[128,128], index: 9, kind: input, shape index: {}]
  %s10 = inlined_call_operand.vmem [shape: f32[1,128], index: 10, kind: input, shape index: {}]
  %s11 = inlined_call_operand.hbm [shape: f32[8,128], index: 11, kind: output, shape index: {0}]
  %s12 = inlined_call_operand.vmem [shape: f32[8,128], index: 12, kind: output, shape index: {1}]
  %13 = xla_tuple %s11, %s12
  %s14 = sld [smem:[#allocation0]]
  $region62: #{ili_fcn_forward.1} parent=0
    _
  %s16 = ssub.s32 1, %s14
  %s17 = scalar_select 0, %s16, %s14
  $region1: #{ili_fcn_forward.1} parent=0
    #allocation2 [shape = 'u8[4096]{0}', space=vmem, size = 0x1000, scoped, tag = 'output window, operand 0, single buffered']
    #allocation3 [shape = 's32[1]{0}', space=sflag, size = 0x4, scoped, tag = 'scoped memory for ili_fcn_forward.1']
    %18 = vsyncpa [#allocation3], 0
    // Predicated region
    $region2: #{ili_fcn_forward.1} parent=1 // pred_check
      _
    $region3: #{ili_fcn_forward.1} parent=1 // pred_check_branch
      %20 = sbr.rel (0) target = $region5
    $region4: #{ili_fcn_forward.1} parent=1 // pred_region
      _
    $region5: #{ili_fcn_forward.1} parent=1 // pred_fallthru
      _
    // Predicated region
    $region6: #{ili_fcn_forward.1} parent=1 // pred_check
      _
    $region7: #{ili_fcn_forward.1} parent=1 // pred_check_branch
      %22 = sbr.rel (0) target = $region9
    $region8: #{ili_fcn_forward.1} parent=1 // pred_region
      _
    $region9: #{ili_fcn_forward.1} parent=1 // pred_fallthru
      _
    // Predicated region
    $region10: #{ili_fcn_forward.1} parent=1 // pred_check
      _
    $region11: #{ili_fcn_forward.1} parent=1 // pred_check_branch
      %24 = sbr.rel (0) target = $region13
    $region12: #{ili_fcn_forward.1} parent=1 // pred_region
      _
    $region13: #{ili_fcn_forward.1} parent=1 // pred_fallthru
      _
    // Predicated region
    $region14: #{ili_fcn_forward.1} parent=1 // pred_check
      _
    $region15: #{ili_fcn_forward.1} parent=1 // pred_check_branch
      %26 = sbr.rel (0) target = $region17
    $region16: #{ili_fcn_forward.1} parent=1 // pred_region
      _
    $region17: #{ili_fcn_forward.1} parent=1 // pred_fallthru
      _
    // Predicated region
    $region18: #{ili_fcn_forward.1} parent=1 // pred_check
      _
    $region19: #{ili_fcn_forward.1} parent=1 // pred_check_branch
      %28 = sbr.rel (0) target = $region21
    $region20: #{ili_fcn_forward.1} parent=1 // pred_region
      _
    $region21: #{ili_fcn_forward.1} parent=1 // pred_fallthru
      _
    // Predicated region
    $region22: #{ili_fcn_forward.1} parent=1 // pred_check
      _
    $region23: #{ili_fcn_forward.1} parent=1 // pred_check_branch
      %30 = sbr.rel (0) target = $region25
    $region24: #{ili_fcn_forward.1} parent=1 // pred_region
      _
    $region25: #{ili_fcn_forward.1} parent=1 // pred_fallthru
      _
    // Predicated region
    $region26: #{ili_fcn_forward.1} parent=1 // pred_check
      _
    $region27: #{ili_fcn_forward.1} parent=1 // pred_check_branch
      %32 = sbr.rel (0) target = $region29
    $region28: #{ili_fcn_forward.1} parent=1 // pred_region
      _
    $region29: #{ili_fcn_forward.1} parent=1 // pred_fallthru
      _
    // Predicated region
    $region30: #{ili_fcn_forward.1} parent=1 // pred_check
      _
    $region31: #{ili_fcn_forward.1} parent=1 // pred_check_branch
      %34 = sbr.rel (0) target = $region33
    $region32: #{ili_fcn_forward.1} parent=1 // pred_region
      _
    $region33: #{ili_fcn_forward.1} parent=1 // pred_fallthru
      _
    // Predicated region
    $region34: #{ili_fcn_forward.1} parent=1 // pred_check
      _
    $region35: #{ili_fcn_forward.1} parent=1 // pred_check_branch
      %36 = sbr.rel (0) target = $region37
    $region36: #{ili_fcn_forward.1} parent=1 // pred_region
      _
    $region37: #{ili_fcn_forward.1} parent=1 // pred_fallthru
      _
    // Predicated region
    $region38: #{ili_fcn_forward.1} parent=1 // pred_check
      _
    $region39: #{ili_fcn_forward.1} parent=1 // pred_check_branch
      %38 = sbr.rel (0) target = $region41
    $region40: #{ili_fcn_forward.1} parent=1 // pred_region
      _
    $region41: #{ili_fcn_forward.1} parent=1 // pred_fallthru
      _
    // Predicated region
    $region42: #{ili_fcn_forward.1} parent=1 // pred_check
      _
    $region43: #{ili_fcn_forward.1} parent=1 // pred_check_branch
      %40 = sbr.rel (0) target = $region45
    $region44: #{ili_fcn_forward.1} parent=1 // pred_region
      _
    $region45: #{ili_fcn_forward.1} parent=1 // pred_fallthru
      _
    %v41 = vld [vmem:[%s0] sm:$0xff]
    %v42 = vld [vmem:[%s1] sm:$0xff]
    %v43 = vld [vmem:[%s1 + $0x8] sm:$0xff]
    %v44 = vld [vmem:[%s1 + $0x10] sm:$0xff]
    %v45 = vld [vmem:[%s1 + $0x18] sm:$0xff]
    %v46 = vld [vmem:[%s1 + $0x20] sm:$0xff]
    %v47 = vld [vmem:[%s1 + $0x28] sm:$0xff]
    %v48 = vld [vmem:[%s1 + $0x30] sm:$0xff]
    %v49 = vld [vmem:[%s1 + $0x38] sm:$0xff]
    %v50 = vld [vmem:[%s1 + $0x40] sm:$0xff]
    %v51 = vld [vmem:[%s1 + $0x48] sm:$0xff]
    %v52 = vld [vmem:[%s1 + $0x50] sm:$0xff]
    %v53 = vld [vmem:[%s1 + $0x58] sm:$0xff]
    %v54 = vld [vmem:[%s1 + $0x60] sm:$0xff]
    %v55 = vld [vmem:[%s1 + $0x68] sm:$0xff]
    %v56 = vld [vmem:[%s1 + $0x70] sm:$0xff]
    %v57 = vld [vmem:[%s1 + $0x78] sm:$0xff]
    %v58 = vld [vmem:[%s2] sm:$0x1]
    %v60 = vperm.slane %v58, 0
    %62 = vmatpush.msra.mxu0 %v57
    %63 = vmatpush.msra.mxu0 %v56
    %64 = vmatpush.msra.mxu0 %v55
    %65 = vmatpush.msra.mxu0 %v54
    %66 = vmatpush.msra.mxu0 %v53
    %67 = vmatpush.msra.mxu0 %v52
    %68 = vmatpush.msra.mxu0 %v51
    %69 = vmatpush.msra.mxu0 %v50
    %70 = vmatpush.msra.mxu0 %v49
    %71 = vmatpush.msra.mxu0 %v48
    %72 = vmatpush.msra.mxu0 %v47
    %73 = vmatpush.msra.mxu0 %v46
    %74 = vmatpush.msra.mxu0 %v45
    %75 = vmatpush.msra.mxu0 %v44
    %76 = vmatpush.msra.mxu0 %v43
    %77 = vmatpush.msra.mxu0 %v42
    %78 = vmatmul.f32.gmra.mxu0 %v41
    %v79 = vpop.f32.mrf.mxu0
    %v80 = vadd.f32 %v60, %v79
    %81 = vdwg.mxu0
    %v82 = vmax.f32 %v80, 0.0
    %v83 = vld [vmem:[%s3] sm:$0xff]
    %v84 = vld [vmem:[%s3 + $0x8] sm:$0xff]
    %v85 = vld [vmem:[%s3 + $0x10] sm:$0xff]
    %v86 = vld [vmem:[%s3 + $0x18] sm:$0xff]
    %v87 = vld [vmem:[%s3 + $0x20] sm:$0xff]
    %v88 = vld [vmem:[%s3 + $0x28] sm:$0xff]
    %v89 = vld [vmem:[%s3 + $0x30] sm:$0xff]
    %v90 = vld [vmem:[%s3 + $0x38] sm:$0xff]
    %v91 = vld [vmem:[%s3 + $0x40] sm:$0xff]
    %v92 = vld [vmem:[%s3 + $0x48] sm:$0xff]
    %v93 = vld [vmem:[%s3 + $0x50] sm:$0xff]
    %v94 = vld [vmem:[%s3 + $0x58] sm:$0xff]
    %v95 = vld [vmem:[%s3 + $0x60] sm:$0xff]
    %v96 = vld [vmem:[%s3 + $0x68] sm:$0xff]
    %v97 = vld [vmem:[%s3 + $0x70] sm:$0xff]
    %v98 = vld [vmem:[%s3 + $0x78] sm:$0xff]
    %v99 = vld [vmem:[%s4] sm:$0x1]
    %v101 = vperm.slane %v99, 0
    %103 = vmatpush.msra.mxu0 %v98
    %104 = vmatpush.msra.mxu0 %v97
    %105 = vmatpush.msra.mxu0 %v96
    %106 = vmatpush.msra.mxu0 %v95
    %107 = vmatpush.msra.mxu0 %v94
    %108 = vmatpush.msra.mxu0 %v93
    %109 = vmatpush.msra.mxu0 %v92
    %110 = vmatpush.msra.mxu0 %v91
    %111 = vmatpush.msra.mxu0 %v90
    %112 = vmatpush.msra.mxu0 %v89
    %113 = vmatpush.msra.mxu0 %v88
    %114 = vmatpush.msra.mxu0 %v87
    %115 = vmatpush.msra.mxu0 %v86
    %116 = vmatpush.msra.mxu0 %v85
    %117 = vmatpush.msra.mxu0 %v84
    %118 = vmatpush.msra.mxu0 %v83
    %119 = vmatmul.f32.gmra.mxu0 %v82
    %v120 = vpop.f32.mrf.mxu0
    %v121 = vadd.f32 %v101, %v120
    %122 = vdwg.mxu0
    %v123 = vmax.f32 %v121, 0.0
    %v124 = vld [vmem:[%s5] sm:$0xff]
    %v125 = vld [vmem:[%s5 + $0x8] sm:$0xff]
    %v126 = vld [vmem:[%s5 + $0x10] sm:$0xff]
    %v127 = vld [vmem:[%s5 + $0x18] sm:$0xff]
    %v128 = vld [vmem:[%s5 + $0x20] sm:$0xff]
    %v129 = vld [vmem:[%s5 + $0x28] sm:$0xff]
    %v130 = vld [vmem:[%s5 + $0x30] sm:$0xff]
    %v131 = vld [vmem:[%s5 + $0x38] sm:$0xff]
    %v132 = vld [vmem:[%s5 + $0x40] sm:$0xff]
    %v133 = vld [vmem:[%s5 + $0x48] sm:$0xff]
    %v134 = vld [vmem:[%s5 + $0x50] sm:$0xff]
    %v135 = vld [vmem:[%s5 + $0x58] sm:$0xff]
    %v136 = vld [vmem:[%s5 + $0x60] sm:$0xff]
    %v137 = vld [vmem:[%s5 + $0x68] sm:$0xff]
    %v138 = vld [vmem:[%s5 + $0x70] sm:$0xff]
    %v139 = vld [vmem:[%s5 + $0x78] sm:$0xff]
    %v140 = vld [vmem:[%s6] sm:$0x1]
    %v142 = vperm.slane %v140, 0
    %144 = vmatpush.msra.mxu0 %v139
    %145 = vmatpush.msra.mxu0 %v138
    %146 = vmatpush.msra.mxu0 %v137
    %147 = vmatpush.msra.mxu0 %v136
    %148 = vmatpush.msra.mxu0 %v135
    %149 = vmatpush.msra.mxu0 %v134
    %150 = vmatpush.msra.mxu0 %v133
    %151 = vmatpush.msra.mxu0 %v132
    %152 = vmatpush.msra.mxu0 %v131
    %153 = vmatpush.msra.mxu0 %v130
    %154 = vmatpush.msra.mxu0 %v129
    %155 = vmatpush.msra.mxu0 %v128
    %156 = vmatpush.msra.mxu0 %v127
    %157 = vmatpush.msra.mxu0 %v126
    %158 = vmatpush.msra.mxu0 %v125
    %159 = vmatpush.msra.mxu0 %v124
    %160 = vmatmul.f32.gmra.mxu0 %v123
    %v161 = vpop.f32.mrf.mxu0
    %v162 = vadd.f32 %v142, %v161
    %163 = vdwg.mxu0
    %v164 = vmax.f32 %v162, 0.0
    %v165 = vld [vmem:[%s7] sm:$0xff]
    %v166 = vld [vmem:[%s7 + $0x8] sm:$0xff]
    %v167 = vld [vmem:[%s7 + $0x10] sm:$0xff]
    %v168 = vld [vmem:[%s7 + $0x18] sm:$0xff]
    %v169 = vld [vmem:[%s7 + $0x20] sm:$0xff]
    %v170 = vld [vmem:[%s7 + $0x28] sm:$0xff]
    %v171 = vld [vmem:[%s7 + $0x30] sm:$0xff]
    %v172 = vld [vmem:[%s7 + $0x38] sm:$0xff]
    %v173 = vld [vmem:[%s7 + $0x40] sm:$0xff]
    %v174 = vld [vmem:[%s7 + $0x48] sm:$0xff]
    %v175 = vld [vmem:[%s7 + $0x50] sm:$0xff]
    %v176 = vld [vmem:[%s7 + $0x58] sm:$0xff]
    %v177 = vld [vmem:[%s7 + $0x60] sm:$0xff]
    %v178 = vld [vmem:[%s7 + $0x68] sm:$0xff]
    %v179 = vld [vmem:[%s7 + $0x70] sm:$0xff]
    %v180 = vld [vmem:[%s7 + $0x78] sm:$0xff]
    %v181 = vld [vmem:[%s8] sm:$0x1]
    %v183 = vperm.slane %v181, 0
    %185 = vmatpush.msra.mxu0 %v180
    %186 = vmatpush.msra.mxu0 %v179
    %187 = vmatpush.msra.mxu0 %v178
    %188 = vmatpush.msra.mxu0 %v177
    %189 = vmatpush.msra.mxu0 %v176
    %190 = vmatpush.msra.mxu0 %v175
    %191 = vmatpush.msra.mxu0 %v174
    %192 = vmatpush.msra.mxu0 %v173
    %193 = vmatpush.msra.mxu0 %v172
    %194 = vmatpush.msra.mxu0 %v171
    %195 = vmatpush.msra.mxu0 %v170
    %196 = vmatpush.msra.mxu0 %v169
    %197 = vmatpush.msra.mxu0 %v168
    %198 = vmatpush.msra.mxu0 %v167
    %199 = vmatpush.msra.mxu0 %v166
    %200 = vmatpush.msra.mxu0 %v165
    %201 = vmatmul.f32.gmra.mxu0 %v164
    %v202 = vpop.f32.mrf.mxu0
    %v203 = vadd.f32 %v183, %v202
    %204 = vdwg.mxu0
    %v205 = vmax.f32 %v203, 0.0
    %v206 = vld [vmem:[%s9] sm:$0xff]
    %v207 = vld [vmem:[%s9 + $0x8] sm:$0xff]
    %v208 = vld [vmem:[%s9 + $0x10] sm:$0xff]
    %v209 = vld [vmem:[%s9 + $0x18] sm:$0xff]
    %v210 = vld [vmem:[%s9 + $0x20] sm:$0xff]
    %v211 = vld [vmem:[%s9 + $0x28] sm:$0xff]
    %v212 = vld [vmem:[%s9 + $0x30] sm:$0xff]
    %v213 = vld [vmem:[%s9 + $0x38] sm:$0xff]
    %v214 = vld [vmem:[%s9 + $0x40] sm:$0xff]
    %v215 = vld [vmem:[%s9 + $0x48] sm:$0xff]
    %v216 = vld [vmem:[%s9 + $0x50] sm:$0xff]
    %v217 = vld [vmem:[%s9 + $0x58] sm:$0xff]
    %v218 = vld [vmem:[%s9 + $0x60] sm:$0xff]
    %v219 = vld [vmem:[%s9 + $0x68] sm:$0xff]
    %v220 = vld [vmem:[%s9 + $0x70] sm:$0xff]
    %v221 = vld [vmem:[%s9 + $0x78] sm:$0xff]
    %v222 = vld [vmem:[%s10] sm:$0x1]
    %v224 = vperm.slane %v222, 0
    %226 = vmatpush.msra.mxu0 %v221
    %227 = vmatpush.msra.mxu0 %v220
    %228 = vmatpush.msra.mxu0 %v219
    %229 = vmatpush.msra.mxu0 %v218
    %230 = vmatpush.msra.mxu0 %v217
    %231 = vmatpush.msra.mxu0 %v216
    %232 = vmatpush.msra.mxu0 %v215
    %233 = vmatpush.msra.mxu0 %v214
    %234 = vmatpush.msra.mxu0 %v213
    %235 = vmatpush.msra.mxu0 %v212
    %236 = vmatpush.msra.mxu0 %v211
    %237 = vmatpush.msra.mxu0 %v210
    %238 = vmatpush.msra.mxu0 %v209
    %239 = vmatpush.msra.mxu0 %v208
    %240 = vmatpush.msra.mxu0 %v207
    %241 = vmatpush.msra.mxu0 %v206
    %242 = vmatmul.f32.gmra.mxu0 %v205
    %v243 = vpop.f32.mrf.mxu0
    %v244 = vadd.f32 %v224, %v243
    %245 = vdwg.mxu0
    %246 = vst [vmem:[#allocation2] sm:$0xff] %v164
    %247 = vst [vmem:[%s12] sm:$0xff] %v244
    // Predicated region
    $region46: #{ili_fcn_forward.1} parent=1 // pred_check
      _
    $region47: #{ili_fcn_forward.1} parent=1 // pred_check_branch
      %249 = sbr.rel (0) target = $region49
    $region48: #{ili_fcn_forward.1} parent=1 // pred_region
      %251 = vsyncadd [#allocation3], 0
      %s253 = sshll.u32 [#allocation2], 4
      %s254 = int_to_ptr.vmem [resolvable:$true] %s253
      %s255 = sshll.u32 %s11, 4
      %s256 = int_to_ptr.hbm [resolvable:$true] %s255
      %258 = dma.vmem_to_hbm [thread:$0]  %s254, 128, %s256, [#allocation3]
    $region49: #{ili_fcn_forward.1} parent=1 // pred_fallthru
      _
    // Predicated region
    $region50: #{ili_fcn_forward.1} parent=1 // pred_check
      _
    $region51: #{ili_fcn_forward.1} parent=1 // pred_check_branch
      %260 = sbr.rel (0) target = $region53
    $region52: #{ili_fcn_forward.1} parent=1 // pred_region
      _
    $region53: #{ili_fcn_forward.1} parent=1 // pred_fallthru
      _
    // Predicated region
    $region54: #{ili_fcn_forward.1} parent=1 // pred_check
      _
    $region55: #{ili_fcn_forward.1} parent=1 // pred_check_branch
      %262 = sbr.rel (0) target = $region57
    $region56: #{ili_fcn_forward.1} parent=1 // pred_region
      %264 = dma.done [#allocation3], 128
    $region57: #{ili_fcn_forward.1} parent=1 // pred_fallthru
      _
    // Predicated region
    $region58: #{ili_fcn_forward.1} parent=1 // pred_check
      _
    $region59: #{ili_fcn_forward.1} parent=1 // pred_check_branch
      %266 = sbr.rel (0) target = $region61
    $region60: #{ili_fcn_forward.1} parent=1 // pred_region
      _
    $region61: #{ili_fcn_forward.1} parent=1 // pred_fallthru
      _
    %267 = vsyncpa [#allocation3], 1

</llo_original>
